<compile_context>
chip_gen: v7x
topology: tpu7x:2x2x1
jax: 0.10.0
libtpu: 0.0.40
codegen_flags: <defaults>
</compile_context>

<pallas_src>
import functools

import jax
import jax.numpy as jnp
from jax.experimental import pallas as pl
from jax.experimental.pallas import tpu as pltpu

EPS = 1e-5
NEG_SLOPE = 0.01                      # nn.LeakyReLU() default
VMEM_LIMIT = 32 * 1024 * 1024


def _round_up(n, m):
    return (n + m - 1) // m * m


def init_params(key, feature_num, hidden_size):
    """Parameters in PyTorch layouts (Linear weight is (out, in))."""
    d = feature_num - 1
    k1, k2, k3, k4 = jax.random.split(key, 4)
    lim1 = 1.0 / jnp.sqrt(jnp.float32(d))
    lim2 = 1.0 / jnp.sqrt(jnp.float32(hidden_size))
    return {
        "g1": jnp.ones((d,), jnp.float32),
        "be1": jnp.zeros((d,), jnp.float32),
        "w1": jax.random.uniform(k1, (hidden_size, d), jnp.float32, -lim1, lim1),
        "b1": jax.random.uniform(k2, (hidden_size,), jnp.float32, -lim1, lim1),
        "g2": jnp.ones((hidden_size,), jnp.float32),
        "be2": jnp.zeros((hidden_size,), jnp.float32),
        "w2": jax.random.uniform(k3, (1, hidden_size), jnp.float32, -lim2, lim2),
        "b2": jax.random.uniform(k4, (1,), jnp.float32, -lim2, lim2),
    }


def fc_for_graph(x, params, feature_num):
    B, Dtot = x.shape
    D = feature_num - 1
    C0 = Dtot - feature_num          # static offset of x[:, -feature_num:-1]
    H = params["w1"].shape[0]
    assert params["w1"].shape[1] == D

    # Batch tiling: big tiles amortize per-step grid overhead; last tile ragged.
    TILE_B = 512 if B >= 512 else _round_up(B, 8)
    nb = pl.cdiv(B, TILE_B)
    B_pad = nb * TILE_B

    x = x.astype(jnp.float32)

    # ---------------- pass 1: sum(x) and x^T x of the sliced features --------
    def stats_kernel(x_ref, xsum_ref, g_ref):
        i = pl.program_id(0)

        @pl.when(i == 0)
        def _():
            xsum_ref[...] = jnp.zeros_like(xsum_ref)
            g_ref[...] = jnp.zeros_like(g_ref)

        xs = x_ref[...][:, C0:C0 + D]                            # (TILE_B, D)
        row = jax.lax.broadcasted_iota(jnp.int32, (TILE_B, 1), 0)
        valid = (i * TILE_B + row) < B                           # mask ragged tail
        xm = jnp.where(valid, xs, 0.0)
        xsum_ref[...] += jnp.sum(xm, axis=0, keepdims=True)      # (1, D)
        g_ref[...] += jax.lax.dot_general(                       # (D, D) = xm^T xm
            xm, xm, (((0,), (0,)), ((), ())),
            preferred_element_type=jnp.float32)

    xsum, g = pl.pallas_call(
        stats_kernel,
        out_shape=(jax.ShapeDtypeStruct((1, D), jnp.float32),
                   jax.ShapeDtypeStruct((D, D), jnp.float32)),
        grid=(nb,),
        in_specs=[pl.BlockSpec((TILE_B, Dtot), lambda i: (i, 0))],
        out_specs=(pl.BlockSpec((1, D), lambda i: (0, 0)),
                   pl.BlockSpec((D, D), lambda i: (0, 0))),
        compiler_params=pltpu.CompilerParams(
            dimension_semantics=("arbitrary",),
            vmem_limit_bytes=VMEM_LIMIT),
    )(x)

    # -------- fold BN1 -> Linear1 -> BN2 into one affine (tiny wrapper math) --
    mean1 = xsum[0] / B                                          # (D,)
    var1 = jnp.diagonal(g) / B - mean1 * mean1                   # biased (training)
    s1 = params["g1"] * jax.lax.rsqrt(var1 + EPS)
    sh1 = params["be1"] - mean1 * s1
    A = params["w1"] * s1[None, :]                               # (H, D)
    c = params["w1"] @ sh1 + params["b1"]                        # (H,)
    cov = g / B - jnp.outer(mean1, mean1)                        # (D, D)
    mean_h = A @ mean1 + c                                       # (H,)
    var_h = jnp.sum((A @ cov) * A, axis=1)                       # diag(A Cov A^T)
    s2 = params["g2"] * jax.lax.rsqrt(var_h + EPS)
    sh2 = params["be2"] - mean_h * s2
    A2 = A * s2[:, None]                                         # (H, D)
    c2 = c * s2 + sh2                                            # (H,)
    ph = jnp.stack([c2, params["w2"][0]], axis=1)                # (H, 2) packed
    b2 = params["b2"].reshape(1, 1).astype(jnp.float32)          # scalar -> SMEM

    # ---------------- pass 2: forward (parallel over batch tiles) ------------
    def forward_kernel(x_ref, a2_ref, ph_ref, b2_ref, o_ref):
        xs = x_ref[...][:, C0:C0 + D]                            # (TILE_B, D)
        p = ph_ref[...]                                          # (H, 2)
        # (H, D) x (TILE_B, D)^T -> (H, TILE_B): batch lands on the lane axis.
        z = jax.lax.dot_general(
            a2_ref[...], xs, (((1,), (1,)), ((), ())),
            preferred_element_type=jnp.float32) + p[:, 0:1]      # + c2
        a = jnp.where(z >= 0.0, z, NEG_SLOPE * z)                # LeakyReLU (f32)
        # Linear(H -> 1): VPU multiply + cross-sublane reduce; lane-dense row.
        out = jnp.sum(a * p[:, 1:2], axis=0, keepdims=True)      # (1, TILE_B)
        o_ref[...] = (out + b2_ref[0, 0]).astype(o_ref.dtype)

    out_row = pl.pallas_call(
        forward_kernel,
        out_shape=jax.ShapeDtypeStruct((1, B_pad), jnp.float32),
        grid=(nb,),
        in_specs=[pl.BlockSpec((TILE_B, Dtot), lambda i: (i, 0)),
                  pl.BlockSpec((H, D), lambda i: (0, 0)),
                  pl.BlockSpec((H, 2), lambda i: (0, 0)),
                  pl.BlockSpec(memory_space=pltpu.MemorySpace.SMEM)],
        out_specs=pl.BlockSpec((1, TILE_B), lambda i: (0, i)),
        compiler_params=pltpu.CompilerParams(
            dimension_semantics=("parallel",),
            vmem_limit_bytes=VMEM_LIMIT),
    )(x, A2, ph, b2)

    # Drop ragged-tail columns, return (B, 1) like the PyTorch module.
    return out_row[0, :B].reshape(B, 1)


if __name__ == "__main__":
    feature_num = 16       # -> linear input size 15
    hidden_size = 32
    batch = 8
    total_features = 20    # extra leading columns that get sliced away

    key = jax.random.PRNGKey(0)
    kx, kp = jax.random.split(key)
    x = jax.random.normal(kx, (batch, total_features), jnp.float32)
    params = init_params(kp, feature_num, hidden_size)

    fc = jax.jit(functools.partial(fc_for_graph, feature_num=feature_num))
    out = jax.block_until_ready(fc(x, params))
    assert out.shape == (batch, 1)

    # Pure-JAX reference of the PyTorch forward (training-mode BatchNorm).
    def reference(x, p):
        xs = x[:, -feature_num:-1]
        m1 = xs.mean(0)
        v1 = ((xs - m1) ** 2).mean(0)
        xn = (xs - m1) * jax.lax.rsqrt(v1 + EPS) * p["g1"] + p["be1"]
        h = xn @ p["w1"].T + p["b1"]
        m2 = h.mean(0)
        v2 = ((h - m2) ** 2).mean(0)
        hn = (h - m2) * jax.lax.rsqrt(v2 + EPS) * p["g2"] + p["be2"]
        hn = jnp.where(hn >= 0, hn, NEG_SLOPE * hn)
        return hn @ p["w2"].T + p["b2"]

    ref = reference(x, params)
    assert float(jnp.max(jnp.abs(out - ref))) < 1e-3
    print("KERNEL_OK")
</pallas_src>

<mosaic_0001>
module attributes {stable_mosaic.version = 11 : i64} {
  func.func @stats_kernel(%arg0: i32, %arg1: memref<8x20xf32, #tpu.memory_space<vmem>>, %arg2: memref<1x15xf32, #tpu.memory_space<vmem>>, %arg3: memref<15x15xf32, #tpu.memory_space<vmem>>) attributes {dimension_semantics = [#tpu.dimension_semantics<arbitrary>], iteration_bounds = array<i64: 1>, scalar_prefetch = 0 : i64, scratch_operands = 0 : i64, tpu.core_type = #tpu.core_type<tc>, window_params = [{transform_indices = @transform_0, window_bounds = array<i64: 8, 20>}, {pipeline_mode = #tpu.pipeline_mode<synchronous>, transform_indices = @transform_1, window_bounds = array<i64: 1, 15>}, {pipeline_mode = #tpu.pipeline_mode<synchronous>, transform_indices = @transform_2, window_bounds = array<i64: 15, 15>}]} {
    %c0_i32 = arith.constant 0 : i32
    %0 = arith.cmpi eq, %arg0, %c0_i32 : i32
    %1 = arith.extui %0 : i1 to i32
    %c0_i32_0 = arith.constant 0 : i32
    %2 = arith.cmpi ne, %1, %c0_i32_0 : i32
    scf.if %2 {
      %cst_13 = arith.constant 0.000000e+00 : f32
      %24 = vector.broadcast %cst_13 : f32 to vector<1x15xf32>
      %c0_14 = arith.constant 0 : index
      %c0_15 = arith.constant 0 : index
      %25 = vector.load %arg2[%c0_14, %c0_15] : memref<1x15xf32, #tpu.memory_space<vmem>>, vector<1x15xf32>
      tpu.vector_store %arg2[%c0_14, %c0_15], %24 {strides = array<i32>} : memref<1x15xf32, #tpu.memory_space<vmem>>, vector<1x15xf32>,
      %cst_16 = arith.constant 0.000000e+00 : f32
      %26 = vector.broadcast %cst_16 : f32 to vector<15x15xf32>
      %c0_17 = arith.constant 0 : index
      %c0_18 = arith.constant 0 : index
      %27 = vector.load %arg3[%c0_17, %c0_18] : memref<15x15xf32, #tpu.memory_space<vmem>>, vector<15x15xf32>
      tpu.vector_store %arg3[%c0_17, %c0_18], %26 {strides = array<i32>} : memref<15x15xf32, #tpu.memory_space<vmem>>, vector<15x15xf32>,
    } else {
    }
    %c0 = arith.constant 0 : index
    %c0_1 = arith.constant 0 : index
    %3 = vector.load %arg1[%c0, %c0_1] : memref<8x20xf32, #tpu.memory_space<vmem>>, vector<8x20xf32>
    %4 = vector.extract_strided_slice %3 {offsets = [0, 4], sizes = [8, 15], strides = [1, 1]} : vector<8x20xf32> to vector<8x15xf32>
    %5 = tpu.iota {dimensions = array<i32: 0>} : vector<8x1xi32>
    %c8_i32 = arith.constant 8 : i32
    %6 = arith.muli %arg0, %c8_i32 : i32
    %7 = vector.broadcast %6 : i32 to vector<8x1xi32>
    %8 = arith.addi %7, %5 : vector<8x1xi32>
    %c8_i32_2 = arith.constant 8 : i32
    %9 = vector.broadcast %c8_i32_2 : i32 to vector<8x1xi32>
    %10 = arith.cmpi slt, %8, %9 : vector<8x1xi32>
    %cst = arith.constant 0.000000e+00 : f32
    %11 = vector.shape_cast %10 : vector<8x1xi1> to vector<8x1xi1>
    %12 = vector.broadcast %11 : vector<8x1xi1> to vector<8x15xi1>
    %13 = vector.broadcast %cst : f32 to vector<8x15xf32>
    %14 = arith.select %12, %4, %13 : vector<8x15xi1>, vector<8x15xf32>
    %c0_3 = arith.constant 0 : index
    %c0_4 = arith.constant 0 : index
    %15 = vector.load %arg2[%c0_3, %c0_4] : memref<1x15xf32, #tpu.memory_space<vmem>>, vector<1x15xf32>
    %cst_5 = arith.constant dense<0.000000e+00> : vector<15xf32>
    %16 = vector.multi_reduction <add>, %14, %cst_5 [0] : vector<8x15xf32> to vector<15xf32>
    %17 = vector.shape_cast %16 : vector<15xf32> to vector<1x15xf32>
    %18 = arith.addf %15, %17 : vector<1x15xf32>
    %c0_6 = arith.constant 0 : index
    %c0_7 = arith.constant 0 : index
    %19 = vector.load %arg2[%c0_6, %c0_7] : memref<1x15xf32, #tpu.memory_space<vmem>>, vector<1x15xf32>
    tpu.vector_store %arg2[%c0_6, %c0_7], %18 {strides = array<i32>} : memref<1x15xf32, #tpu.memory_space<vmem>>, vector<1x15xf32>,
    %c0_8 = arith.constant 0 : index
    %c0_9 = arith.constant 0 : index
    %20 = vector.load %arg3[%c0_8, %c0_9] : memref<15x15xf32, #tpu.memory_space<vmem>>, vector<15x15xf32>
    %cst_10 = arith.constant dense<0.000000e+00> : vector<15x15xf32>
    %21 = tpu.matmul %14, %14, %cst_10 {dimension_numbers = #tpu.dot_dimension_numbers<[0], [0], [1], [1], [0, 1, 1, 1], [], []>} : vector<8x15xf32>, vector<8x15xf32>, vector<15x15xf32> -> vector<15x15xf32>
    %22 = arith.addf %20, %21 : vector<15x15xf32>
    %c0_11 = arith.constant 0 : index
    %c0_12 = arith.constant 0 : index
    %23 = vector.load %arg3[%c0_11, %c0_12] : memref<15x15xf32, #tpu.memory_space<vmem>>, vector<15x15xf32>
    tpu.vector_store %arg3[%c0_11, %c0_12], %22 {strides = array<i32>} : memref<15x15xf32, #tpu.memory_space<vmem>>, vector<15x15xf32>,
    return
  }
  func.func @transform_0(%arg0: i32) -> (i32, i32) {
    %c0_i32 = arith.constant 0 : i32
    %c0_i32_0 = arith.constant 0 : i32
    return %arg0, %c0_i32 : i32, i32
  }
  func.func @transform_1(%arg0: i32) -> (i32, i32) {
    %c0_i32 = arith.constant 0 : i32
    %c0_i32_0 = arith.constant 0 : i32
    %c0_i32_1 = arith.constant 0 : i32
    return %c0_i32, %c0_i32_0 : i32, i32
  }
  func.func @transform_2(%arg0: i32) -> (i32, i32) {
    %c0_i32 = arith.constant 0 : i32
    %c0_i32_0 = arith.constant 0 : i32
    %c0_i32_1 = arith.constant 0 : i32
    return %c0_i32, %c0_i32_0 : i32, i32
  }
}

module attributes {stable_mosaic.version = 11 : i64} {
  func.func @forward_kernel(%arg0: i32, %arg1: memref<8x20xf32, #tpu.memory_space<vmem>>, %arg2: memref<32x15xf32, #tpu.memory_space<vmem>>, %arg3: memref<32x2xf32, #tpu.memory_space<vmem>>, %arg4: memref<1x1xf32, #tpu.memory_space<smem>>, %arg5: memref<1x8xf32, #tpu.memory_space<vmem>>) attributes {dimension_semantics = [#tpu.dimension_semantics<parallel>], iteration_bounds = array<i64: 1>, scalar_prefetch = 0 : i64, scratch_operands = 0 : i64, tpu.core_type = #tpu.core_type<tc>, window_params = [{transform_indices = @transform_0, window_bounds = array<i64: 8, 20>}, {pipeline_mode = #tpu.pipeline_mode<synchronous>, transform_indices = @transform_1, window_bounds = array<i64: 32, 15>}, {pipeline_mode = #tpu.pipeline_mode<synchronous>, transform_indices = @transform_2, window_bounds = array<i64: 32, 2>}, {transform_indices = @transform_3, window_bounds = array<i64: 1, 1>}, {transform_indices = @transform_4, window_bounds = array<i64: 1, 8>}]} {
    %c0 = arith.constant 0 : index
    %c0_0 = arith.constant 0 : index
    %0 = vector.load %arg1[%c0, %c0_0] : memref<8x20xf32, #tpu.memory_space<vmem>>, vector<8x20xf32>
    %1 = vector.extract_strided_slice %0 {offsets = [0, 4], sizes = [8, 15], strides = [1, 1]} : vector<8x20xf32> to vector<8x15xf32>
    %c0_1 = arith.constant 0 : index
    %c0_2 = arith.constant 0 : index
    %2 = vector.load %arg3[%c0_1, %c0_2] : memref<32x2xf32, #tpu.memory_space<vmem>>, vector<32x2xf32>
    %c0_3 = arith.constant 0 : index
    %c0_4 = arith.constant 0 : index
    %3 = vector.load %arg2[%c0_3, %c0_4] : memref<32x15xf32, #tpu.memory_space<vmem>>, vector<32x15xf32>
    %cst = arith.constant dense<0.000000e+00> : vector<32x8xf32>
    %4 = tpu.matmul %3, %1, %cst {dimension_numbers = #tpu.dot_dimension_numbers<[1], [1], [0], [0], [0, 0, 1, 0], [], []>} : vector<32x15xf32>, vector<8x15xf32>, vector<32x8xf32> -> vector<32x8xf32>
    %5 = vector.extract_strided_slice %2 {offsets = [0, 0], sizes = [32, 1], strides = [1, 1]} : vector<32x2xf32> to vector<32x1xf32>
    %6 = vector.broadcast %5 : vector<32x1xf32> to vector<32x8xf32>
    %7 = arith.addf %4, %6 : vector<32x8xf32>
    %cst_5 = arith.constant 0.000000e+00 : f32
    %8 = vector.broadcast %cst_5 : f32 to vector<32x8xf32>
    %9 = arith.cmpf oge, %7, %8 : vector<32x8xf32>
    %cst_6 = arith.constant 0.00999999977 : f32
    %10 = vector.broadcast %cst_6 : f32 to vector<32x8xf32>
    %11 = arith.mulf %10, %7 : vector<32x8xf32>
    %12 = arith.select %9, %7, %11 : vector<32x8xi1>, vector<32x8xf32>
    %13 = vector.extract_strided_slice %2 {offsets = [0, 1], sizes = [32, 1], strides = [1, 1]} : vector<32x2xf32> to vector<32x1xf32>
    %14 = vector.broadcast %13 : vector<32x1xf32> to vector<32x8xf32>
    %15 = arith.mulf %12, %14 : vector<32x8xf32>
    %cst_7 = arith.constant dense<0.000000e+00> : vector<8xf32>
    %16 = vector.multi_reduction <add>, %15, %cst_7 [0] : vector<32x8xf32> to vector<8xf32>
    %17 = vector.shape_cast %16 : vector<8xf32> to vector<1x8xf32>
    %c0_8 = arith.constant 0 : index
    %c0_9 = arith.constant 0 : index
    %18 = memref.load %arg4[%c0_8, %c0_9] : memref<1x1xf32, #tpu.memory_space<smem>>
    %19 = vector.broadcast %18 : f32 to vector<1x8xf32>
    %20 = arith.addf %17, %19 : vector<1x8xf32>
    %c0_10 = arith.constant 0 : index
    %c0_11 = arith.constant 0 : index
    %21 = vector.load %arg5[%c0_10, %c0_11] : memref<1x8xf32, #tpu.memory_space<vmem>>, vector<1x8xf32>
    tpu.vector_store %arg5[%c0_10, %c0_11], %20 {strides = array<i32>} : memref<1x8xf32, #tpu.memory_space<vmem>>, vector<1x8xf32>,
    return
  }
  func.func @transform_0(%arg0: i32) -> (i32, i32) {
    %c0_i32 = arith.constant 0 : i32
    %c0_i32_0 = arith.constant 0 : i32
    return %arg0, %c0_i32 : i32, i32
  }
  func.func @transform_1(%arg0: i32) -> (i32, i32) {
    %c0_i32 = arith.constant 0 : i32
    %c0_i32_0 = arith.constant 0 : i32
    %c0_i32_1 = arith.constant 0 : i32
    return %c0_i32, %c0_i32_0 : i32, i32
  }
  func.func @transform_2(%arg0: i32) -> (i32, i32) {
    %c0_i32 = arith.constant 0 : i32
    %c0_i32_0 = arith.constant 0 : i32
    %c0_i32_1 = arith.constant 0 : i32
    return %c0_i32, %c0_i32_0 : i32, i32
  }
  func.func @transform_3(%arg0: i32) -> (i32, i32) {
    %c0_i32 = arith.constant 0 : i32
    %c0_i32_0 = arith.constant 0 : i32
    %c0_i32_1 = arith.constant 0 : i32
    return %c0_i32, %c0_i32_0 : i32, i32
  }
  func.func @transform_4(%arg0: i32) -> (i32, i32) {
    %c0_i32 = arith.constant 0 : i32
    %c0_i32_0 = arith.constant 0 : i32
    return %c0_i32, %arg0 : i32, i32
  }
}

</mosaic_0001>

<llo_original>
// kernel: fc_for_graph.3
$region0: #{fc_for_graph.3}
  #allocation0 [shape = 'u32[]', space=smem, size = 0x4, offset = 0x4, fixed_abs, tag = 'smem constant byte address 0x4 - core index']
  #allocation1 [shape = 'u32[144,128]{1,0:T(1,128)}', space=vmem, size = 0x12000, scoped, tag = 'internal scratch']
  #allocation2 [shape = 'f32[1,1]{1,0:T(1,128)S(6)}', space=smem, size = 0x200, scoped, tag = 'scoped memory for fc_for_graph.3']
  %s0 = inlined_call_operand.vmem [shape: f32[8,20], index: 0, kind: input, shape index: {}]
  %s1 = inlined_call_operand.vmem [shape: f32[32,15], index: 1, kind: input, shape index: {}]
  %s2 = inlined_call_operand.vmem [shape: f32[32,2], index: 2, kind: input, shape index: {}]
  %s3 = inlined_call_operand.<no memory space> [shape: f32[1,1], index: 3, kind: input, shape index: {}]
  %s4 = inlined_call_operand.hbm [shape: f32[1,8], index: 4, kind: output, shape index: {}]
  %s5 = sld [smem:[#allocation0]]
  $region26: #{fc_for_graph.3} parent=0
    _
  %s7 = ssub.s32 1, %s5
  %s8 = scalar_select 0, %s7, %s5
  %9 = sst [smem:[#allocation2]] %s3
  $region1: #{fc_for_graph.3} parent=0
    #allocation3 [shape = 'u8[512]{0}', space=vmem, size = 0x400, scoped, tag = 'output window, operand 0, single buffered']
    #allocation4 [shape = 's32[1]{0}', space=sflag, size = 0x4, scoped, tag = 'scoped memory for fc_for_graph.3']
    %10 = vsyncpa [#allocation4], 0
    // Predicated region
    $region2: #{fc_for_graph.3} parent=1 // pred_check
      _
    $region3: #{fc_for_graph.3} parent=1 // pred_check_branch
      %12 = sbr.rel (0) target = $region5
    $region4: #{fc_for_graph.3} parent=1 // pred_region
      _
    $region5: #{fc_for_graph.3} parent=1 // pred_fallthru
      _
    // Predicated region
    $region6: #{fc_for_graph.3} parent=1 // pred_check
      _
    $region7: #{fc_for_graph.3} parent=1 // pred_check_branch
      %14 = sbr.rel (0) target = $region9
    $region8: #{fc_for_graph.3} parent=1 // pred_region
      _
    $region9: #{fc_for_graph.3} parent=1 // pred_fallthru
      _
    // Predicated region
    $region10: #{fc_for_graph.3} parent=1 // pred_check
      _
    $region11: #{fc_for_graph.3} parent=1 // pred_check_branch
      %16 = sbr.rel (0) target = $region13
    $region12: #{fc_for_graph.3} parent=1 // pred_region
      _
    $region13: #{fc_for_graph.3} parent=1 // pred_fallthru
      _
    // Predicated region
    $region14: #{fc_for_graph.3} parent=1 // pred_check
      _
    $region15: #{fc_for_graph.3} parent=1 // pred_check_branch
      %18 = sbr.rel (0) target = $region17
    $region16: #{fc_for_graph.3} parent=1 // pred_region
      _
    $region17: #{fc_for_graph.3} parent=1 // pred_fallthru
      _
    %v19 = vld [vmem:[%s0] sm:$0xff]
    %v20 = vld [vmem:[%s2] sm:$0xff]
    %v21 = vld [vmem:[%s2 + $0x8] sm:$0xff]
    %v22 = vld [vmem:[%s2 + $0x10] sm:$0xff]
    %v23 = vld [vmem:[%s2 + $0x18] sm:$0xff]
    %v24 = vld [vmem:[%s1] sm:$0xff]
    %v25 = vld [vmem:[%s1 + $0x8] sm:$0xff]
    %v26 = vld [vmem:[%s1 + $0x10] sm:$0xff]
    %v27 = vld [vmem:[%s1 + $0x18] sm:$0xff]
    %29 = vset.pattern.permute.xlu0 0
    %30 = vperm.xlu0 %29, %v20
    %v31 = vpop.permute.xlu0 %30
    %34 = vset.pattern.permute.xlu0 0
    %35 = vperm.xlu0 %34, %v21
    %v36 = vpop.permute.xlu0 %35
    %39 = vset.pattern.permute.xlu0 0
    %40 = vperm.xlu0 %39, %v22
    %v41 = vpop.permute.xlu0 %40
    %44 = vset.pattern.permute.xlu0 0
    %45 = vperm.xlu0 %44, %v23
    %v46 = vpop.permute.xlu0 %45
    %49 = vrot.lane.b32.xlu0 %v19, 124
    %v50 = vpop.permute.xlu0 %49
    %vm51 = vcmask 121856
    %v53 = vsel %vm51, %v24, 0
    %v56 = vsel %vm51, %v25, 0
    %v59 = vsel %vm51, %v26, 0
    %v62 = vsel %vm51, %v27, 0
    %v64 = vsel %vm51, %v50, 0
    %66 = vmatprep.subr.mxu0 0.0
    %67 = vmatpush1.xpose.msra.mxu0 %v64
    %68 = vmatprep.subr.mxu0 0.0
    %69 = vmatpush1.xpose.msra.mxu0 0.0
    %70 = vmatprep.subr.mxu0 0.0
    %71 = vmatpush1.xpose.msra.mxu0 0.0
    %72 = vmatprep.subr.mxu0 0.0
    %73 = vmatpush1.xpose.msra.mxu0 0.0
    %74 = vmatprep.subr.mxu0 0.0
    %75 = vmatpush1.xpose.msra.mxu0 0.0
    %76 = vmatprep.subr.mxu0 0.0
    %77 = vmatpush1.xpose.msra.mxu0 0.0
    %78 = vmatprep.subr.mxu0 0.0
    %79 = vmatpush1.xpose.msra.mxu0 0.0
    %80 = vmatprep.subr.mxu0 0.0
    %81 = vmatpush1.xpose.msra.mxu0 0.0
    %82 = vmatprep.subr.mxu0 0.0
    %83 = vmatpush1.xpose.msra.mxu0 0.0
    %84 = vmatprep.subr.mxu0 0.0
    %85 = vmatpush1.xpose.msra.mxu0 0.0
    %86 = vmatprep.subr.mxu0 0.0
    %87 = vmatpush1.xpose.msra.mxu0 0.0
    %88 = vmatprep.subr.mxu0 0.0
    %89 = vmatpush1.xpose.msra.mxu0 0.0
    %90 = vmatprep.subr.mxu0 0.0
    %91 = vmatpush1.xpose.msra.mxu0 0.0
    %92 = vmatprep.subr.mxu0 0.0
    %93 = vmatpush1.xpose.msra.mxu0 0.0
    %94 = vmatprep.subr.mxu0 0.0
    %95 = vmatpush1.xpose.msra.mxu0 0.0
    %96 = vmatprep.subr.mxu0 0.0
    %97 = vmatpush1.xpose.msra.mxu0 0.0
    %98 = vmatprep.subr.mxu0 0.0
    %99 = vmatpush1.xpose.msra.mxu0 0.0
    %100 = vmatprep.subr.mxu0 0.0
    %101 = vmatpush1.xpose.msra.mxu0 0.0
    %102 = vmatprep.subr.mxu0 0.0
    %103 = vmatpush1.xpose.msra.mxu0 0.0
    %104 = vmatprep.subr.mxu0 0.0
    %105 = vmatpush1.xpose.msra.mxu0 0.0
    %106 = vmatprep.subr.mxu0 0.0
    %107 = vmatpush1.xpose.msra.mxu0 0.0
    %108 = vmatprep.subr.mxu0 0.0
    %109 = vmatpush1.xpose.msra.mxu0 0.0
    %110 = vmatprep.subr.mxu0 0.0
    %111 = vmatpush1.xpose.msra.mxu0 0.0
    %112 = vmatprep.subr.mxu0 0.0
    %113 = vmatpush1.xpose.msra.mxu0 0.0
    %114 = vmatprep.subr.mxu0 0.0
    %115 = vmatpush1.xpose.msra.mxu0 0.0
    %116 = vmatprep.subr.mxu0 0.0
    %117 = vmatpush1.xpose.msra.mxu0 0.0
    %118 = vmatprep.subr.mxu0 0.0
    %119 = vmatpush1.xpose.msra.mxu0 0.0
    %120 = vmatprep.subr.mxu0 0.0
    %121 = vmatpush1.xpose.msra.mxu0 0.0
    %122 = vmatprep.subr.mxu0 0.0
    %123 = vmatpush1.xpose.msra.mxu0 0.0
    %124 = vmatprep.subr.mxu0 0.0
    %125 = vmatpush1.xpose.msra.mxu0 0.0
    %126 = vmatprep.subr.mxu0 0.0
    %127 = vmatpush1.xpose.msra.mxu0 0.0
    %128 = vmatprep.subr.mxu0 0.0
    %129 = vmatpush1.xpose.msra.mxu0 0.0
    %130 = vmatprep.mubr.f32.mxu0 0.0
    %131 = vmatmul.mubr.f32.gmra.mrb[0].mxu0 %v53
    %v132 = vpop.f32.mrb[0].mxu0
    %v133 = vadd.f32 %v31, %v132
    %v134 = vpop.f32.mrb[0].mxu0
    %135 = vmatprep.mubr.f32.mxu0 0.0
    %136 = vmatmul.mubr.f32.gmra.mrb[0].mxu0 %v56
    %v137 = vpop.f32.mrb[0].mxu0
    %v138 = vadd.f32 %v36, %v137
    %v139 = vpop.f32.mrb[0].mxu0
    %140 = vmatprep.mubr.f32.mxu0 0.0
    %141 = vmatmul.mubr.f32.gmra.mrb[0].mxu0 %v59
    %v142 = vpop.f32.mrb[0].mxu0
    %v143 = vadd.f32 %v41, %v142
    %v144 = vpop.f32.mrb[0].mxu0
    %145 = vmatprep.mubr.f32.mxu0 0.0
    %146 = vmatmul.mubr.f32.gmra.mrb[0].mxu0 %v62
    %v147 = vpop.f32.mrb[0].mxu0
    %v148 = vadd.f32 %v46, %v147
    %v149 = vpop.f32.mrb[0].mxu0
    %150 = vdwg.mxu0
    %vm151 = vcmp.ge.f32.partialorder %v133, 0.0
    %vm152 = vcmp.ge.f32.partialorder %v138, 0.0
    %vm153 = vcmp.ge.f32.partialorder %v143, 0.0
    %vm154 = vcmp.ge.f32.partialorder %v148, 0.0
    %v155 = vmul.f32 %v133, 0.01
    %v156 = vmul.f32 %v138, 0.01
    %v157 = vmul.f32 %v143, 0.01
    %v158 = vmul.f32 %v148, 0.01
    %v159 = vsel %vm151, %v133, %v155
    %v160 = vsel %vm152, %v138, %v156
    %v161 = vsel %vm153, %v143, %v157
    %v162 = vsel %vm154, %v148, %v158
    %163 = vset.pattern.permute.xlu0 1
    %164 = vperm.xlu0 %163, %v20
    %v165 = vpop.permute.xlu0 %164
    %167 = vset.pattern.permute.xlu0 1
    %168 = vperm.xlu0 %167, %v21
    %v169 = vpop.permute.xlu0 %168
    %171 = vset.pattern.permute.xlu0 1
    %172 = vperm.xlu0 %171, %v22
    %v173 = vpop.permute.xlu0 %172
    %175 = vset.pattern.permute.xlu0 1
    %176 = vperm.xlu0 %175, %v23
    %v177 = vpop.permute.xlu0 %176
    %v179 = vmul.f32 %v159, %v165
    %v180 = vmul.f32 %v160, %v169
    %v181 = vmul.f32 %v161, %v173
    %v182 = vmul.f32 %v162, %v177
    %vm183 = vcmask 64512
    %v184 = vsel %vm183, %v179, 0.0
    %v185 = vsel %vm183, %v180, 0.0
    %v186 = vadd.f32 %v184, %v185
    %v187 = vsel %vm183, %v181, 0.0
    %v188 = vadd.f32 %v186, %v187
    %v189 = vsel %vm183, %v182, 0.0
    %v190 = vadd.f32 %v188, %v189
    %v191 = vrot.slane %v190, 4
    %v192 = vadd.f32 %v190, %v191
    %v193 = vrot.slane %v192, 2
    %v194 = vadd.f32 %v192, %v193
    %v195 = vrot.slane %v194, 1
    %v196 = vadd.f32 %v194, %v195
    %s197 = sld [smem:[#allocation2]]
    %v198 = vstv %s197
    %v199 = vadd.f32 %v196, %v198
    %vm200 = vcmask 57344
    %201 = vst.msk [vmem:[#allocation3] sm:$0x1] %vm200, %v199
    // Predicated region
    $region18: #{fc_for_graph.3} parent=1 // pred_check
      _
    $region19: #{fc_for_graph.3} parent=1 // pred_check_branch
      %203 = sbr.rel (0) target = $region21
    $region20: #{fc_for_graph.3} parent=1 // pred_region
      %s205 = ssub.s32 16, 16
      %206 = vsyncadd [#allocation4], %s205
      %s208 = sshll.u32 [#allocation3], 4
      %s209 = int_to_ptr.vmem [resolvable:$true] %s208
      %211 = dma.vmem_to_hbm [thread:$0]  %s209, 16, %s4, [#allocation4]
    $region21: #{fc_for_graph.3} parent=1 // pred_fallthru
      _
    // Predicated region
    $region22: #{fc_for_graph.3} parent=1 // pred_check
      _
    $region23: #{fc_for_graph.3} parent=1 // pred_check_branch
      %213 = sbr.rel (0) target = $region25
    $region24: #{fc_for_graph.3} parent=1 // pred_region
      %214 = dma.done [#allocation4], 16
    $region25: #{fc_for_graph.3} parent=1 // pred_fallthru
      _
    %215 = vsyncpa [#allocation4], 1

// kernel: fc_for_graph.2
$region0: #{fc_for_graph.2}
  #allocation0 [shape = 'u32[]', space=smem, size = 0x4, offset = 0x4, fixed_abs, tag = 'smem constant byte address 0x4 - core index']
  #allocation1 [shape = 'u32[144,128]{1,0:T(1,128)}', space=vmem, size = 0x12000, scoped, tag = 'internal scratch']
  %s0 = inlined_call_operand.vmem [shape: f32[8,20], index: 0, kind: input, shape index: {}]
  %s1 = inlined_call_operand.vmem [shape: f32[1,15], index: 1, kind: output, shape index: {0}]
  %s2 = inlined_call_operand.vmem [shape: f32[15,15], index: 2, kind: output, shape index: {1}]
  %3 = xla_tuple %s1, %s2
  %s4 = sld [smem:[#allocation0]]
  $region26: #{fc_for_graph.2} parent=0
    _
  %s6 = ssub.s32 1, %s4
  %s7 = scalar_select 0, %s6, %s4
  // Predicated region
  $region2: #{fc_for_graph.2} parent=0 // pred_check
    _
  $region3: #{fc_for_graph.2} parent=0 // pred_check_branch
    %9 = sbr.rel (0) target = $region5
  $region4: #{fc_for_graph.2} parent=0 // pred_region
    _
  $region5: #{fc_for_graph.2} parent=0 // pred_fallthru
    _
  %p10 = scmp.eq.s32.totalorder 0, 0
  // Predicated region
  $region6: #{fc_for_graph.2} parent=0 // pred_check
    %p11 = pneg %p10
  $region7: #{fc_for_graph.2} parent=0 // pred_check_branch
    %13 = sbr.rel (%p11) target = $region9
  $region8: #{fc_for_graph.2} parent=0 // pred_region
    %vm14 = vcmask 114688
    %15 = vst.msk [vmem:[%s1] sm:$0x1] %vm14, 0.0
    %vm16 = vcmask 121856
    %17 = vst.msk [vmem:[%s2] sm:$0xff] %vm16, 0.0
    %vm18 = vcmask 120832
    %19 = vst.msk [vmem:[%s2 + $0x8] sm:$0x7f] %vm18, 0.0
  $region9: #{fc_for_graph.2} parent=0 // pred_fallthru
    _
  %v20 = vld [vmem:[%s0] sm:$0xff]
  %v21 = vlaneseq
  %v22 = vshrl.u32 %v21, 7
  %s23 = smul.u32 0, 8
  %v24 = vstv %s23
  %v25 = vadd.s32 %v24, %v22
  %vm26 = vcmp.lt.s32.totalorder %v25, 8
  %v27 = vsel %vm26, 1, 0
  %vm28 = vcmp.eq.s32.totalorder %v27, 1
  %v29 = vsel %vm28, %v20, 0.0
  %v30 = vld [vmem:[%s1] sm:$0x1]
  %vm31 = vcmask 154656
  %v32 = vsel %vm31, %v29, 0.0
  %v33 = vrot.slane %v32, 4
  %v34 = vadd.f32 %v32, %v33
  %v35 = vrot.slane %v34, 2
  %v36 = vadd.f32 %v34, %v35
  %v37 = vrot.slane %v36, 1
  %v38 = vadd.f32 %v36, %v37
  %v41 = vunpack.c.l.s4 1966171168
  %v42 = vunpack.c.0.s8 %v41
  %v43 = vlaneseq
  %v44 = vshrl.u32 %v43, 7
  %v45 = vsub.s32 %v42, %v44
  %v46 = vrot.slane %v38, %v45
  %v48 = vunpack.c.l.s4 1966171168
  %v49 = vunpack.c.0.s8 %v48
  %v50 = vlaneseq
  %v51 = vshrl.u32 %v50, 7
  %v52 = vsub.s32 %v49, %v51
  %v53 = vrot.slane %v46, %v52
  %54 = vrot.lane.b32.xlu0 %v53, 124
  %v55 = vpop.permute.xlu0 %54
  %v57 = vadd.f32 %v30, %v55
  %vm58 = vcmask 114688
  %59 = vst.msk [vmem:[%s1] sm:$0x1] %vm58, %v57
  %v60 = vld [vmem:[%s2] sm:$0xff]
  %v61 = vld [vmem:[%s2 + $0x8] sm:$0x7f]
  %63 = vrot.lane.b32.xlu0 %v29, 124
  %v64 = vpop.permute.xlu0 %63
  %66 = vxpose.xlu0.b32.start [1/16] %v64, 128
  %67 = vxpose.xlu0.b32.cont [2/16] 0.0, 128
  %68 = vxpose.xlu0.b32.cont [3/16] 0.0, 128
  %69 = vxpose.xlu0.b32.cont [4/16] 0.0, 128
  %70 = vxpose.xlu0.b32.cont [5/16] 0.0, 128
  %71 = vxpose.xlu0.b32.cont [6/16] 0.0, 128
  %72 = vxpose.xlu0.b32.cont [7/16] 0.0, 128
  %73 = vxpose.xlu0.b32.cont [8/16] 0.0, 128
  %74 = vxpose.xlu0.b32.cont [9/16] 0.0, 128
  %75 = vxpose.xlu0.b32.cont [10/16] 0.0, 128
  %76 = vxpose.xlu0.b32.cont [11/16] 0.0, 128
  %77 = vxpose.xlu0.b32.cont [12/16] 0.0, 128
  %78 = vxpose.xlu0.b32.cont [13/16] 0.0, 128
  %79 = vxpose.xlu0.b32.cont [14/16] 0.0, 128
  %80 = vxpose.xlu0.b32.cont [15/16] 0.0, 128
  %81 = vxpose.xlu0.b32.end [16/16] 0.0, 128
  %v82 = vpop.trf.xlu0
  %v83 = vpop.trf.xlu0
  %v84 = vpop.trf.xlu0
  %v85 = vpop.trf.xlu0
  %v86 = vpop.trf.xlu0
  %v87 = vpop.trf.xlu0
  %v88 = vpop.trf.xlu0
  %v89 = vpop.trf.xlu0
  %v90 = vpop.trf.xlu0
  %v91 = vpop.trf.xlu0
  %v92 = vpop.trf.xlu0
  %v93 = vpop.trf.xlu0
  %v94 = vpop.trf.xlu0
  %v95 = vpop.trf.xlu0
  %v96 = vpop.trf.xlu0
  %v97 = vpop.trf.xlu0
  %vm98 = vcmask 64512
  %v100 = vsel %vm98, %v82, 0
  %v103 = vsel %vm98, %v83, 0
  %105 = vmatprep.subr.mxu0 0.0
  %106 = vmatpush1.msra.mxu0 %v64
  %107 = vmatprep.subr.mxu0 0.0
  %108 = vmatpush1.msra.mxu0 0.0
  %109 = vmatprep.subr.mxu0 0.0
  %110 = vmatpush1.msra.mxu0 0.0
  %111 = vmatprep.subr.mxu0 0.0
  %112 = vmatpush1.msra.mxu0 0.0
  %113 = vmatprep.subr.mxu0 0.0
  %114 = vmatpush1.msra.mxu0 0.0
  %115 = vmatprep.subr.mxu0 0.0
  %116 = vmatpush1.msra.mxu0 0.0
  %117 = vmatprep.subr.mxu0 0.0
  %118 = vmatpush1.msra.mxu0 0.0
  %119 = vmatprep.subr.mxu0 0.0
  %120 = vmatpush1.msra.mxu0 0.0
  %121 = vmatprep.subr.mxu0 0.0
  %122 = vmatpush1.msra.mxu0 0.0
  %123 = vmatprep.subr.mxu0 0.0
  %124 = vmatpush1.msra.mxu0 0.0
  %125 = vmatprep.subr.mxu0 0.0
  %126 = vmatpush1.msra.mxu0 0.0
  %127 = vmatprep.subr.mxu0 0.0
  %128 = vmatpush1.msra.mxu0 0.0
  %129 = vmatprep.subr.mxu0 0.0
  %130 = vmatpush1.msra.mxu0 0.0
  %131 = vmatprep.subr.mxu0 0.0
  %132 = vmatpush1.msra.mxu0 0.0
  %133 = vmatprep.subr.mxu0 0.0
  %134 = vmatpush1.msra.mxu0 0.0
  %135 = vmatprep.subr.mxu0 0.0
  %136 = vmatpush1.msra.mxu0 0.0
  %137 = vmatprep.subr.mxu0 0.0
  %138 = vmatpush1.msra.mxu0 0.0
  %139 = vmatprep.subr.mxu0 0.0
  %140 = vmatpush1.msra.mxu0 0.0
  %141 = vmatprep.subr.mxu0 0.0
  %142 = vmatpush1.msra.mxu0 0.0
  %143 = vmatprep.subr.mxu0 0.0
  %144 = vmatpush1.msra.mxu0 0.0
  %145 = vmatprep.subr.mxu0 0.0
  %146 = vmatpush1.msra.mxu0 0.0
  %147 = vmatprep.subr.mxu0 0.0
  %148 = vmatpush1.msra.mxu0 0.0
  %149 = vmatprep.subr.mxu0 0.0
  %150 = vmatpush1.msra.mxu0 0.0
  %151 = vmatprep.subr.mxu0 0.0
  %152 = vmatpush1.msra.mxu0 0.0
  %153 = vmatprep.subr.mxu0 0.0
  %154 = vmatpush1.msra.mxu0 0.0
  %155 = vmatprep.subr.mxu0 0.0
  %156 = vmatpush1.msra.mxu0 0.0
  %157 = vmatprep.subr.mxu0 0.0
  %158 = vmatpush1.msra.mxu0 0.0
  %159 = vmatprep.subr.mxu0 0.0
  %160 = vmatpush1.msra.mxu0 0.0
  %161 = vmatprep.subr.mxu0 0.0
  %162 = vmatpush1.msra.mxu0 0.0
  %163 = vmatprep.subr.mxu0 0.0
  %164 = vmatpush1.msra.mxu0 0.0
  %165 = vmatprep.subr.mxu0 0.0
  %166 = vmatpush1.msra.mxu0 0.0
  %167 = vmatprep.subr.mxu0 0.0
  %168 = vmatpush1.msra.mxu0 0.0
  %169 = vmatprep.mubr.f32.mxu0 0.0
  %170 = vmatmul.mubr.f32.gmra.mrb[0].mxu0 %v100
  %v171 = vpop.f32.mrb[0].mxu0
  %v172 = vadd.f32 0.0, %v171
  %v173 = vpop.f32.mrb[0].mxu0
  %174 = vmatprep.mubr.f32.mxu0 0.0
  %175 = vmatmul.mubr.f32.gmra.mrb[0].mxu0 %v103
  %v176 = vpop.f32.mrb[0].mxu0
  %v177 = vadd.f32 0.0, %v176
  %v178 = vpop.f32.mrb[0].mxu0
  %179 = vdwg.mxu0
  %v180 = vadd.f32 %v60, %v172
  %v181 = vadd.f32 %v61, %v177
  %vm182 = vcmask 121856
  %183 = vst.msk [vmem:[%s2] sm:$0xff] %vm182, %v180
  %vm184 = vcmask 120832
  %185 = vst.msk [vmem:[%s2 + $0x8] sm:$0x7f] %vm184, %v181
  // Predicated region
  $region10: #{fc_for_graph.2} parent=0 // pred_check
    _
  $region11: #{fc_for_graph.2} parent=0 // pred_check_branch
    %187 = sbr.rel (0) target = $region13
  $region12: #{fc_for_graph.2} parent=0 // pred_region
    _
  $region13: #{fc_for_graph.2} parent=0 // pred_fallthru
    _
  // Predicated region
  $region14: #{fc_for_graph.2} parent=0 // pred_check
    _
  $region15: #{fc_for_graph.2} parent=0 // pred_check_branch
    %189 = sbr.rel (0) target = $region17
  $region16: #{fc_for_graph.2} parent=0 // pred_region
    _
  $region17: #{fc_for_graph.2} parent=0 // pred_fallthru
    _
  // Predicated region
  $region18: #{fc_for_graph.2} parent=0 // pred_check
    _
  $region19: #{fc_for_graph.2} parent=0 // pred_check_branch
    %191 = sbr.rel (0) target = $region21
  $region20: #{fc_for_graph.2} parent=0 // pred_region
    _
  $region21: #{fc_for_graph.2} parent=0 // pred_fallthru
    _
  // Predicated region
  $region22: #{fc_for_graph.2} parent=0 // pred_check
    _
  $region23: #{fc_for_graph.2} parent=0 // pred_check_branch
    %193 = sbr.rel (0) target = $region25
  $region24: #{fc_for_graph.2} parent=0 // pred_region
    _
  $region25: #{fc_for_graph.2} parent=0 // pred_fallthru
    _

</llo_original>
